<compile_context>
chip_gen: v5e
topology: v5e:2x2
jax: 0.10.0
libtpu: 0.0.40
codegen_flags: <defaults>
</compile_context>

<pallas_src>
import jax
import jax.numpy as jnp
from jax.experimental import pallas as pl
from jax.experimental.pallas import tpu as pltpu

EPS = 1e-5  # nn.BatchNorm1d default eps


def _bn_relu(h, gamma, beta):
    """Training-mode BatchNorm1d (one-pass batch stats) + ReLU.  h is f32 (B,F)."""
    inv_n = 1.0 / h.shape[0]
    mean = jnp.sum(h, axis=0, keepdims=True) * inv_n
    ex2 = jnp.sum(h * h, axis=0, keepdims=True) * inv_n
    var = jnp.maximum(ex2 - mean * mean, 0.0)        # biased batch variance
    h = (h - mean) * (jax.lax.rsqrt(var + EPS) * gamma) + beta
    return jnp.maximum(h, 0.0)


def _flat2dann_kernel(x1_ref, x2_ref,
                      w1a_ref, w1b_ref, g1_ref, be1_ref,
                      w2_ref, g2_ref, be2_ref,
                      wd_ref, bd_ref,
                      out_ref):
    mm_dtype = w1a_ref.dtype                          # matmul-operand dtype (bf16 or f32)

    # ---- linear1 (split-K over [input_symbol | memory]) + bn1 + relu1 ------
    # linear1 bias omitted: exactly cancelled by the BN mean subtraction.
    h = jnp.dot(x1_ref[...].astype(mm_dtype), w1a_ref[...],
                preferred_element_type=jnp.float32)
    h = h + jnp.dot(x2_ref[...].astype(mm_dtype), w1b_ref[...],
                    preferred_element_type=jnp.float32)
    h = _bn_relu(h, g1_ref[...], be1_ref[...])

    # ---- linear2 + bn2 + relu2 (bias again cancelled by BN) ----------------
    h = jnp.dot(h.astype(mm_dtype), w2_ref[...],
                preferred_element_type=jnp.float32)
    h = _bn_relu(h, g2_ref[...], be2_ref[...])

    # ---- decision linear + softmax over dim=1 ------------------------------
    logits = jnp.dot(h.astype(mm_dtype), wd_ref[...],
                     preferred_element_type=jnp.float32) + bd_ref[...]
    logits = logits - jnp.max(logits, axis=1, keepdims=True)
    e = jnp.exp(logits)
    # Exact normalization (approx reciprocal broke the row-sum guarantee and
    # the denominator is only B x T elements, so the exact divide is free).
    out_ref[...] = e / jnp.sum(e, axis=1, keepdims=True)


def _full_spec(shape):
    # whole array as a single VMEM block (no grid)
    return pl.BlockSpec(shape, lambda: (0,) * len(shape))


def prepare_params(p, input_dim, matmul_dtype=jnp.bfloat16):
    """One-time parameter prep (NOT in the per-call path).

    PyTorch-convention params (Linear weight (out,in), bias (out,)) ->
    kernel layout: weights transposed to (in,out), W1 split at `input_dim`,
    matmul operands cast to `matmul_dtype`; 1-D BN/bias params lifted to
    (1,dim) f32.  linear1/linear2 biases are dropped (cancelled by BatchNorm).
    """
    F = p["w1"].shape[0]
    T = p["wd"].shape[0]
    w1t = p["w1"].T.astype(matmul_dtype)              # (F_in, F_out)
    return {
        "w1a": w1t[:input_dim],                       # (input_dim, F)
        "w1b": w1t[input_dim:],                       # (memory_dim, F)
        "w2": p["w2"].T.astype(matmul_dtype),         # (F, F)
        "wd": p["wd"].T.astype(matmul_dtype),         # (F, T)
        "g1": p["g1"].reshape(1, F).astype(jnp.float32),
        "be1": p["be1"].reshape(1, F).astype(jnp.float32),
        "g2": p["g2"].reshape(1, F).astype(jnp.float32),
        "be2": p["be2"].reshape(1, F).astype(jnp.float32),
        "bd": p["bd"].reshape(1, T).astype(jnp.float32),
    }


@jax.jit
def flat2dann_forward(input_symbol, memory, prep):
    """Forward pass.  `prep` comes from prepare_params (kernel-ready layout)."""
    B = input_symbol.shape[0]
    F = prep["w2"].shape[0]
    T = prep["wd"].shape[1]

    args = (input_symbol, memory,
            prep["w1a"], prep["w1b"], prep["g1"], prep["be1"],
            prep["w2"], prep["g2"], prep["be2"],
            prep["wd"], prep["bd"])

    in_bytes = sum(int(a.size) * a.dtype.itemsize for a in args)
    out_bytes = B * T * 4
    cost = pl.CostEstimate(
        flops=2 * B * F * (2 * F + T) + 12 * B * F + 6 * B * T,
        transcendentals=B * T + 2 * F,
        bytes_accessed=in_bytes + out_bytes,
    )

    return pl.pallas_call(
        _flat2dann_kernel,
        out_shape=jax.ShapeDtypeStruct((B, T), jnp.float32),
        in_specs=[_full_spec(a.shape) for a in args],
        out_specs=_full_spec((B, T)),
        cost_estimate=cost,
        compiler_params=pltpu.CompilerParams(vmem_limit_bytes=32 * 1024 * 1024),
    )(*args)


def _init_params(key, input_dim, memory_dim, target_dim):
    """PyTorch-convention parameters for a fresh Flat2DANN."""
    F = input_dim + memory_dim
    ks = jax.random.split(key, 6)
    return {
        # nn.Linear convention: weight (out, in), bias (out,)
        "w1": 0.1 * jax.random.normal(ks[0], (F, F), jnp.float32),
        "b1": 0.1 * jax.random.normal(ks[1], (F,), jnp.float32),
        "w2": 0.1 * jax.random.normal(ks[2], (F, F), jnp.float32),
        "b2": 0.1 * jax.random.normal(ks[3], (F,), jnp.float32),
        "wd": 0.1 * jax.random.normal(ks[4], (target_dim, F), jnp.float32),
        "bd": 0.1 * jax.random.normal(ks[5], (target_dim,), jnp.float32),
        # BatchNorm1d affine params as freshly initialized: gamma=1, beta=0
        "g1": jnp.ones((F,), jnp.float32),
        "be1": jnp.zeros((F,), jnp.float32),
        "g2": jnp.ones((F,), jnp.float32),
        "be2": jnp.zeros((F,), jnp.float32),
    }


def _reference(input_symbol, memory, p):
    """Pure-JAX f32 reference with full PyTorch semantics (incl. pre-BN biases)."""
    flat = jnp.concatenate([input_symbol, memory], axis=1)

    def block(x, w, b, g, be):
        h = x @ w.T + b
        m = h.mean(0, keepdims=True)
        v = ((h - m) ** 2).mean(0, keepdims=True)     # biased variance
        return jnp.maximum((h - m) / jnp.sqrt(v + EPS) * g + be, 0.0)

    h = block(flat, p["w1"], p["b1"], p["g1"], p["be1"])
    h = block(h, p["w2"], p["b2"], p["g2"], p["be2"])
    return jax.nn.softmax(h @ p["wd"].T + p["bd"], axis=1)


if __name__ == "__main__":
    input_dim, memory_dim, target_dim = 12, 20, 16
    batch = 8

    key = jax.random.PRNGKey(0)
    k_in, k_mem, k_par = jax.random.split(key, 3)
    input_symbol = jax.random.normal(k_in, (batch, input_dim), jnp.float32)
    memory = jax.random.normal(k_mem, (batch, memory_dim), jnp.float32)
    torch_params = _init_params(k_par, input_dim, memory_dim, target_dim)
    ref = _reference(input_symbol, memory, torch_params)

    # f32-matmul path: tight check vs full-precision PyTorch semantics (the
    # only perturbation is one-pass BN batch statistics).
    prep_f32 = prepare_params(torch_params, input_dim, matmul_dtype=jnp.float32)
    out_f32 = jax.block_until_ready(flat2dann_forward(input_symbol, memory, prep_f32))
    assert out_f32.shape == (batch, target_dim)
    assert jnp.allclose(out_f32, ref, atol=1e-3, rtol=1e-3)
    assert jnp.allclose(jnp.sum(out_f32, axis=1), 1.0, atol=1e-3)

    # bf16 matmul-operand path (perf config for v5e/v6e/v7x MXU): loose check
    # on values, exact-normalization check on row sums.
    prep_bf16 = prepare_params(torch_params, input_dim, matmul_dtype=jnp.bfloat16)
    out_bf16 = jax.block_until_ready(flat2dann_forward(input_symbol, memory, prep_bf16))
    assert out_bf16.shape == (batch, target_dim)
    assert jnp.allclose(out_bf16, ref, atol=2e-2)
    assert jnp.allclose(jnp.sum(out_bf16, axis=1), 1.0, atol=1e-3)

    print("KERNEL_OK")
</pallas_src>

<mosaic_0001>
module attributes {stable_mosaic.version = 11 : i64} {
  func.func @_flat2dann_kernel(%arg0: memref<8x12xf32, #tpu.memory_space<vmem>>, %arg1: memref<8x20xf32, #tpu.memory_space<vmem>>, %arg2: memref<12x32xf32, #tpu.memory_space<vmem>>, %arg3: memref<20x32xf32, #tpu.memory_space<vmem>>, %arg4: memref<1x32xf32, #tpu.memory_space<vmem>>, %arg5: memref<1x32xf32, #tpu.memory_space<vmem>>, %arg6: memref<32x32xf32, #tpu.memory_space<vmem>>, %arg7: memref<1x32xf32, #tpu.memory_space<vmem>>, %arg8: memref<1x32xf32, #tpu.memory_space<vmem>>, %arg9: memref<32x16xf32, #tpu.memory_space<vmem>>, %arg10: memref<1x16xf32, #tpu.memory_space<vmem>>, %arg11: memref<8x16xf32, #tpu.memory_space<vmem>>) attributes {dimension_semantics = [], scalar_prefetch = 0 : i64, scratch_operands = 0 : i64, tpu.core_type = #tpu.core_type<tc>} {
    %c0 = arith.constant 0 : index
    %c0_0 = arith.constant 0 : index
    %0 = vector.load %arg0[%c0, %c0_0] : memref<8x12xf32, #tpu.memory_space<vmem>>, vector<8x12xf32>
    %c0_1 = arith.constant 0 : index
    %c0_2 = arith.constant 0 : index
    %1 = vector.load %arg2[%c0_1, %c0_2] : memref<12x32xf32, #tpu.memory_space<vmem>>, vector<12x32xf32>
    %cst = arith.constant dense<0.000000e+00> : vector<8x32xf32>
    %2 = tpu.matmul %0, %1, %cst {dimension_numbers = #tpu.dot_dimension_numbers<[1], [0], [0], [1], [0, 0, 1, 1], [], []>} : vector<8x12xf32>, vector<12x32xf32>, vector<8x32xf32> -> vector<8x32xf32>
    %c0_3 = arith.constant 0 : index
    %c0_4 = arith.constant 0 : index
    %3 = vector.load %arg1[%c0_3, %c0_4] : memref<8x20xf32, #tpu.memory_space<vmem>>, vector<8x20xf32>
    %c0_5 = arith.constant 0 : index
    %c0_6 = arith.constant 0 : index
    %4 = vector.load %arg3[%c0_5, %c0_6] : memref<20x32xf32, #tpu.memory_space<vmem>>, vector<20x32xf32>
    %cst_7 = arith.constant dense<0.000000e+00> : vector<8x32xf32>
    %5 = tpu.matmul %3, %4, %cst_7 {dimension_numbers = #tpu.dot_dimension_numbers<[1], [0], [0], [1], [0, 0, 1, 1], [], []>} : vector<8x20xf32>, vector<20x32xf32>, vector<8x32xf32> -> vector<8x32xf32>
    %6 = arith.addf %2, %5 : vector<8x32xf32>
    %c0_8 = arith.constant 0 : index
    %c0_9 = arith.constant 0 : index
    %7 = vector.load %arg4[%c0_8, %c0_9] : memref<1x32xf32, #tpu.memory_space<vmem>>, vector<1x32xf32>
    %c0_10 = arith.constant 0 : index
    %c0_11 = arith.constant 0 : index
    %8 = vector.load %arg5[%c0_10, %c0_11] : memref<1x32xf32, #tpu.memory_space<vmem>>, vector<1x32xf32>
    %cst_12 = arith.constant dense<0.000000e+00> : vector<32xf32>
    %9 = vector.multi_reduction <add>, %6, %cst_12 [0] : vector<8x32xf32> to vector<32xf32>
    %10 = vector.shape_cast %9 : vector<32xf32> to vector<1x32xf32>
    %cst_13 = arith.constant 1.250000e-01 : f32
    %11 = vector.broadcast %cst_13 : f32 to vector<1x32xf32>
    %12 = arith.mulf %10, %11 : vector<1x32xf32>
    %13 = arith.mulf %6, %6 : vector<8x32xf32>
    %cst_14 = arith.constant dense<0.000000e+00> : vector<32xf32>
    %14 = vector.multi_reduction <add>, %13, %cst_14 [0] : vector<8x32xf32> to vector<32xf32>
    %15 = vector.shape_cast %14 : vector<32xf32> to vector<1x32xf32>
    %cst_15 = arith.constant 1.250000e-01 : f32
    %16 = vector.broadcast %cst_15 : f32 to vector<1x32xf32>
    %17 = arith.mulf %15, %16 : vector<1x32xf32>
    %18 = arith.mulf %12, %12 : vector<1x32xf32>
    %19 = arith.subf %17, %18 : vector<1x32xf32>
    %cst_16 = arith.constant 0.000000e+00 : f32
    %20 = vector.broadcast %cst_16 : f32 to vector<1x32xf32>
    %21 = arith.maximumf %19, %20 : vector<1x32xf32>
    %22 = vector.broadcast %12 : vector<1x32xf32> to vector<8x32xf32>
    %23 = arith.subf %6, %22 : vector<8x32xf32>
    %cst_17 = arith.constant 9.99999974E-6 : f32
    %24 = vector.broadcast %cst_17 : f32 to vector<1x32xf32>
    %25 = arith.addf %21, %24 : vector<1x32xf32>
    %26 = math.rsqrt %25 : vector<1x32xf32>
    %27 = arith.mulf %26, %7 : vector<1x32xf32>
    %28 = vector.broadcast %27 : vector<1x32xf32> to vector<8x32xf32>
    %29 = arith.mulf %23, %28 : vector<8x32xf32>
    %30 = vector.broadcast %8 : vector<1x32xf32> to vector<8x32xf32>
    %31 = arith.addf %29, %30 : vector<8x32xf32>
    %cst_18 = arith.constant 0.000000e+00 : f32
    %32 = vector.broadcast %cst_18 : f32 to vector<8x32xf32>
    %33 = arith.maximumf %31, %32 : vector<8x32xf32>
    %c0_19 = arith.constant 0 : index
    %c0_20 = arith.constant 0 : index
    %34 = vector.load %arg6[%c0_19, %c0_20] : memref<32x32xf32, #tpu.memory_space<vmem>>, vector<32x32xf32>
    %cst_21 = arith.constant dense<0.000000e+00> : vector<8x32xf32>
    %35 = tpu.matmul %33, %34, %cst_21 {dimension_numbers = #tpu.dot_dimension_numbers<[1], [0], [0], [1], [0, 0, 1, 1], [], []>} : vector<8x32xf32>, vector<32x32xf32>, vector<8x32xf32> -> vector<8x32xf32>
    %c0_22 = arith.constant 0 : index
    %c0_23 = arith.constant 0 : index
    %36 = vector.load %arg7[%c0_22, %c0_23] : memref<1x32xf32, #tpu.memory_space<vmem>>, vector<1x32xf32>
    %c0_24 = arith.constant 0 : index
    %c0_25 = arith.constant 0 : index
    %37 = vector.load %arg8[%c0_24, %c0_25] : memref<1x32xf32, #tpu.memory_space<vmem>>, vector<1x32xf32>
    %cst_26 = arith.constant dense<0.000000e+00> : vector<32xf32>
    %38 = vector.multi_reduction <add>, %35, %cst_26 [0] : vector<8x32xf32> to vector<32xf32>
    %39 = vector.shape_cast %38 : vector<32xf32> to vector<1x32xf32>
    %cst_27 = arith.constant 1.250000e-01 : f32
    %40 = vector.broadcast %cst_27 : f32 to vector<1x32xf32>
    %41 = arith.mulf %39, %40 : vector<1x32xf32>
    %42 = arith.mulf %35, %35 : vector<8x32xf32>
    %cst_28 = arith.constant dense<0.000000e+00> : vector<32xf32>
    %43 = vector.multi_reduction <add>, %42, %cst_28 [0] : vector<8x32xf32> to vector<32xf32>
    %44 = vector.shape_cast %43 : vector<32xf32> to vector<1x32xf32>
    %cst_29 = arith.constant 1.250000e-01 : f32
    %45 = vector.broadcast %cst_29 : f32 to vector<1x32xf32>
    %46 = arith.mulf %44, %45 : vector<1x32xf32>
    %47 = arith.mulf %41, %41 : vector<1x32xf32>
    %48 = arith.subf %46, %47 : vector<1x32xf32>
    %cst_30 = arith.constant 0.000000e+00 : f32
    %49 = vector.broadcast %cst_30 : f32 to vector<1x32xf32>
    %50 = arith.maximumf %48, %49 : vector<1x32xf32>
    %51 = vector.broadcast %41 : vector<1x32xf32> to vector<8x32xf32>
    %52 = arith.subf %35, %51 : vector<8x32xf32>
    %cst_31 = arith.constant 9.99999974E-6 : f32
    %53 = vector.broadcast %cst_31 : f32 to vector<1x32xf32>
    %54 = arith.addf %50, %53 : vector<1x32xf32>
    %55 = math.rsqrt %54 : vector<1x32xf32>
    %56 = arith.mulf %55, %36 : vector<1x32xf32>
    %57 = vector.broadcast %56 : vector<1x32xf32> to vector<8x32xf32>
    %58 = arith.mulf %52, %57 : vector<8x32xf32>
    %59 = vector.broadcast %37 : vector<1x32xf32> to vector<8x32xf32>
    %60 = arith.addf %58, %59 : vector<8x32xf32>
    %cst_32 = arith.constant 0.000000e+00 : f32
    %61 = vector.broadcast %cst_32 : f32 to vector<8x32xf32>
    %62 = arith.maximumf %60, %61 : vector<8x32xf32>
    %c0_33 = arith.constant 0 : index
    %c0_34 = arith.constant 0 : index
    %63 = vector.load %arg9[%c0_33, %c0_34] : memref<32x16xf32, #tpu.memory_space<vmem>>, vector<32x16xf32>
    %cst_35 = arith.constant dense<0.000000e+00> : vector<8x16xf32>
    %64 = tpu.matmul %62, %63, %cst_35 {dimension_numbers = #tpu.dot_dimension_numbers<[1], [0], [0], [1], [0, 0, 1, 1], [], []>} : vector<8x32xf32>, vector<32x16xf32>, vector<8x16xf32> -> vector<8x16xf32>
    %c0_36 = arith.constant 0 : index
    %c0_37 = arith.constant 0 : index
    %65 = vector.load %arg10[%c0_36, %c0_37] : memref<1x16xf32, #tpu.memory_space<vmem>>, vector<1x16xf32>
    %66 = vector.broadcast %65 : vector<1x16xf32> to vector<8x16xf32>
    %67 = arith.addf %64, %66 : vector<8x16xf32>
    %cst_38 = arith.constant dense<0xFF800000> : vector<8xf32>
    %68 = vector.multi_reduction <maximumf>, %67, %cst_38 [1] : vector<8x16xf32> to vector<8xf32>
    %69 = vector.shape_cast %68 : vector<8xf32> to vector<8x1xf32>
    %70 = vector.broadcast %69 : vector<8x1xf32> to vector<8x16xf32>
    %71 = arith.subf %67, %70 : vector<8x16xf32>
    %72 = math.exp %71 : vector<8x16xf32>
    %cst_39 = arith.constant dense<0.000000e+00> : vector<8xf32>
    %73 = vector.multi_reduction <add>, %72, %cst_39 [1] : vector<8x16xf32> to vector<8xf32>
    %74 = vector.shape_cast %73 : vector<8xf32> to vector<8x1xf32>
    %75 = vector.broadcast %74 : vector<8x1xf32> to vector<8x16xf32>
    %76 = arith.divf %72, %75 : vector<8x16xf32>
    %c0_40 = arith.constant 0 : index
    %c0_41 = arith.constant 0 : index
    %77 = vector.load %arg11[%c0_40, %c0_41] : memref<8x16xf32, #tpu.memory_space<vmem>>, vector<8x16xf32>
    tpu.vector_store %arg11[%c0_40, %c0_41], %76 {strides = array<i32>} : memref<8x16xf32, #tpu.memory_space<vmem>>, vector<8x16xf32>,
    return
  }
}

</mosaic_0001>

<llo_original>
// kernel: flat2dann_forward.1
$region0: #{flat2dann_forward.1}
  #allocation0 [shape = 'u32[]', space=smem, size = 0x4, offset = 0x4, fixed_abs, tag = 'smem constant byte address 0x4 - core index']
  #allocation1 [shape = 'u32[72,128]{1,0:T(1,128)}', space=vmem, size = 0x9000, scoped, tag = 'internal scratch']
  %s0 = inlined_call_operand.hbm [shape: f32[8,12], index: 0, kind: input, shape index: {}]
  %s1 = inlined_call_operand.hbm [shape: f32[8,20], index: 1, kind: input, shape index: {}]
  %s2 = inlined_call_operand.hbm [shape: f32[12,32], index: 2, kind: input, shape index: {}]
  %s3 = inlined_call_operand.vmem [shape: f32[20,32], index: 3, kind: input, shape index: {}]
  %s4 = inlined_call_operand.hbm [shape: f32[1,32], index: 4, kind: input, shape index: {}]
  %s5 = inlined_call_operand.hbm [shape: f32[1,32], index: 5, kind: input, shape index: {}]
  %s6 = inlined_call_operand.vmem [shape: f32[32,32], index: 6, kind: input, shape index: {}]
  %s7 = inlined_call_operand.hbm [shape: f32[1,32], index: 7, kind: input, shape index: {}]
  %s8 = inlined_call_operand.hbm [shape: f32[1,32], index: 8, kind: input, shape index: {}]
  %s9 = inlined_call_operand.vmem [shape: f32[32,16], index: 9, kind: input, shape index: {}]
  %s10 = inlined_call_operand.hbm [shape: f32[1,16], index: 10, kind: input, shape index: {}]
  %s11 = inlined_call_operand.hbm [shape: f32[8,16], index: 11, kind: output, shape index: {}]
  %s12 = sld [smem:[#allocation0]]
  $region86: #{flat2dann_forward.1} parent=0
    _
  %s14 = ssub.s32 1, %s12
  %s15 = scalar_select 0, %s14, %s12
  $region1: #{flat2dann_forward.1} parent=0
    #allocation2 [shape = 'u8[4096]{0}', space=vmem, size = 0x1000, scoped, tag = 'input window, operand 0, single buffered']
    #allocation3 [shape = 's32[1]{0}', space=sflag, size = 0x4, scoped, tag = 'scoped memory for flat2dann_forward.1']
    #allocation4 [shape = 's32[1]{0}', space=sflag, size = 0x4, scoped, tag = 'scoped memory for flat2dann_forward.1']
    #allocation5 [shape = 'u8[4096]{0}', space=vmem, size = 0x1000, scoped, tag = 'input window, operand 1, single buffered']
    #allocation6 [shape = 's32[1]{0}', space=sflag, size = 0x4, scoped, tag = 'scoped memory for flat2dann_forward.1']
    #allocation7 [shape = 'u8[8192]{0}', space=vmem, size = 0x2000, scoped, tag = 'input window, operand 2, single buffered']
    #allocation8 [shape = 'u8[512]{0}', space=vmem, size = 0x400, scoped, tag = 'input window, operand 4, single buffered']
    #allocation9 [shape = 's32[1]{0}', space=sflag, size = 0x4, scoped, tag = 'scoped memory for flat2dann_forward.1']
    #allocation10 [shape = 'u8[512]{0}', space=vmem, size = 0x400, scoped, tag = 'input window, operand 5, single buffered']
    #allocation11 [shape = 'u8[512]{0}', space=vmem, size = 0x400, scoped, tag = 'input window, operand 7, single buffered']
    #allocation12 [shape = 's32[1]{0}', space=sflag, size = 0x4, scoped, tag = 'scoped memory for flat2dann_forward.1']
    #allocation13 [shape = 'u8[512]{0}', space=vmem, size = 0x400, scoped, tag = 'input window, operand 8, single buffered']
    #allocation14 [shape = 'u8[512]{0}', space=vmem, size = 0x400, scoped, tag = 'input window, operand 10, single buffered']
    #allocation15 [shape = 's32[1]{0}', space=sflag, size = 0x4, scoped, tag = 'scoped memory for flat2dann_forward.1']
    #allocation16 [shape = 'u8[4096]{0}', space=vmem, size = 0x1000, scoped, tag = 'output window, operand 0, single buffered']
    %16 = vsyncpa [#allocation3], 0
    %17 = vsyncpa [#allocation6], 0
    %18 = vsyncpa [#allocation9], 0
    %19 = vsyncpa [#allocation12], 0
    %20 = vsyncpa [#allocation15], 0
    %21 = vsyncpa [#allocation4], 0
    // Predicated region
    $region2: #{flat2dann_forward.1} parent=1 // pred_check
      _
    $region3: #{flat2dann_forward.1} parent=1 // pred_check_branch
      %23 = sbr.rel (0) target = $region5
    $region4: #{flat2dann_forward.1} parent=1 // pred_region
      %25 = vsyncadd [#allocation3], 0
      %s27 = sshll.u32 %s0, 4
      %s28 = int_to_ptr.hbm [resolvable:$true] %s27
      %s29 = sshll.u32 [#allocation2], 4
      %s30 = int_to_ptr.vmem [resolvable:$true] %s29
      %32 = dma.hbm_to_vmem [thread:$0]  %s28, 128, %s30, [#allocation3]
    $region5: #{flat2dann_forward.1} parent=1 // pred_fallthru
      _
    // Predicated region
    $region6: #{flat2dann_forward.1} parent=1 // pred_check
      _
    $region7: #{flat2dann_forward.1} parent=1 // pred_check_branch
      %34 = sbr.rel (0) target = $region9
    $region8: #{flat2dann_forward.1} parent=1 // pred_region
      %36 = vsyncadd [#allocation6], 0
      %s38 = sshll.u32 %s1, 4
      %s39 = int_to_ptr.hbm [resolvable:$true] %s38
      %s40 = sshll.u32 [#allocation5], 4
      %s41 = int_to_ptr.vmem [resolvable:$true] %s40
      %43 = dma.hbm_to_vmem [thread:$0]  %s39, 128, %s41, [#allocation6]
    $region9: #{flat2dann_forward.1} parent=1 // pred_fallthru
      _
    // Predicated region
    $region10: #{flat2dann_forward.1} parent=1 // pred_check
      _
    $region11: #{flat2dann_forward.1} parent=1 // pred_check_branch
      %45 = sbr.rel (0) target = $region13
    $region12: #{flat2dann_forward.1} parent=1 // pred_region
      %47 = vsyncadd [#allocation6], 0
      %s48 = sshll.u32 %s2, 4
      %s49 = int_to_ptr.hbm [resolvable:$true] %s48
      %s50 = sshll.u32 [#allocation7], 4
      %s51 = int_to_ptr.vmem [resolvable:$true] %s50
      %56 = dma.hbm_to_vmem [thread:$0]  %s49, 256, %s51, [#allocation6], 128, 128, 8
    $region13: #{flat2dann_forward.1} parent=1 // pred_fallthru
      _
    // Predicated region
    $region14: #{flat2dann_forward.1} parent=1 // pred_check
      _
    $region15: #{flat2dann_forward.1} parent=1 // pred_check_branch
      %58 = sbr.rel (0) target = $region17
    $region16: #{flat2dann_forward.1} parent=1 // pred_region
      _
    $region17: #{flat2dann_forward.1} parent=1 // pred_fallthru
      _
    // Predicated region
    $region18: #{flat2dann_forward.1} parent=1 // pred_check
      _
    $region19: #{flat2dann_forward.1} parent=1 // pred_check_branch
      %60 = sbr.rel (0) target = $region21
    $region20: #{flat2dann_forward.1} parent=1 // pred_region
      %62 = vsyncadd [#allocation9], 0
      %s64 = sshll.u32 %s4, 4
      %s65 = int_to_ptr.hbm [resolvable:$true] %s64
      %s66 = sshll.u32 [#allocation8], 4
      %s67 = int_to_ptr.vmem [resolvable:$true] %s66
      %69 = dma.hbm_to_vmem [thread:$0]  %s65, 16, %s67, [#allocation9]
    $region21: #{flat2dann_forward.1} parent=1 // pred_fallthru
      _
    // Predicated region
    $region22: #{flat2dann_forward.1} parent=1 // pred_check
      _
    $region23: #{flat2dann_forward.1} parent=1 // pred_check_branch
      %71 = sbr.rel (0) target = $region25
    $region24: #{flat2dann_forward.1} parent=1 // pred_region
      %73 = vsyncadd [#allocation9], 0
      %s75 = sshll.u32 %s5, 4
      %s76 = int_to_ptr.hbm [resolvable:$true] %s75
      %s77 = sshll.u32 [#allocation10], 4
      %s78 = int_to_ptr.vmem [resolvable:$true] %s77
      %80 = dma.hbm_to_vmem [thread:$0]  %s76, 16, %s78, [#allocation9]
    $region25: #{flat2dann_forward.1} parent=1 // pred_fallthru
      _
    // Predicated region
    $region26: #{flat2dann_forward.1} parent=1 // pred_check
      _
    $region27: #{flat2dann_forward.1} parent=1 // pred_check_branch
      %82 = sbr.rel (0) target = $region29
    $region28: #{flat2dann_forward.1} parent=1 // pred_region
      _
    $region29: #{flat2dann_forward.1} parent=1 // pred_fallthru
      _
    // Predicated region
    $region30: #{flat2dann_forward.1} parent=1 // pred_check
      _
    $region31: #{flat2dann_forward.1} parent=1 // pred_check_branch
      %84 = sbr.rel (0) target = $region33
    $region32: #{flat2dann_forward.1} parent=1 // pred_region
      %86 = vsyncadd [#allocation12], 0
      %s88 = sshll.u32 %s7, 4
      %s89 = int_to_ptr.hbm [resolvable:$true] %s88
      %s90 = sshll.u32 [#allocation11], 4
      %s91 = int_to_ptr.vmem [resolvable:$true] %s90
      %93 = dma.hbm_to_vmem [thread:$0]  %s89, 16, %s91, [#allocation12]
    $region33: #{flat2dann_forward.1} parent=1 // pred_fallthru
      _
    // Predicated region
    $region34: #{flat2dann_forward.1} parent=1 // pred_check
      _
    $region35: #{flat2dann_forward.1} parent=1 // pred_check_branch
      %95 = sbr.rel (0) target = $region37
    $region36: #{flat2dann_forward.1} parent=1 // pred_region
      %97 = vsyncadd [#allocation12], 0
      %s99 = sshll.u32 %s8, 4
      %s100 = int_to_ptr.hbm [resolvable:$true] %s99
      %s101 = sshll.u32 [#allocation13], 4
      %s102 = int_to_ptr.vmem [resolvable:$true] %s101
      %104 = dma.hbm_to_vmem [thread:$0]  %s100, 16, %s102, [#allocation12]
    $region37: #{flat2dann_forward.1} parent=1 // pred_fallthru
      _
    // Predicated region
    $region38: #{flat2dann_forward.1} parent=1 // pred_check
      _
    $region39: #{flat2dann_forward.1} parent=1 // pred_check_branch
      %106 = sbr.rel (0) target = $region41
    $region40: #{flat2dann_forward.1} parent=1 // pred_region
      _
    $region41: #{flat2dann_forward.1} parent=1 // pred_fallthru
      _
    // Predicated region
    $region42: #{flat2dann_forward.1} parent=1 // pred_check
      _
    $region43: #{flat2dann_forward.1} parent=1 // pred_check_branch
      %108 = sbr.rel (0) target = $region45
    $region44: #{flat2dann_forward.1} parent=1 // pred_region
      %110 = vsyncadd [#allocation15], 0
      %s112 = sshll.u32 %s10, 4
      %s113 = int_to_ptr.hbm [resolvable:$true] %s112
      %s114 = sshll.u32 [#allocation14], 4
      %s115 = int_to_ptr.vmem [resolvable:$true] %s114
      %117 = dma.hbm_to_vmem [thread:$0]  %s113, 16, %s115, [#allocation15]
    $region45: #{flat2dann_forward.1} parent=1 // pred_fallthru
      _
    // Predicated region
    $region46: #{flat2dann_forward.1} parent=1 // pred_check
      _
    $region47: #{flat2dann_forward.1} parent=1 // pred_check_branch
      %119 = sbr.rel (0) target = $region49
    $region48: #{flat2dann_forward.1} parent=1 // pred_region
      %121 = dma.done [#allocation3], 128
    $region49: #{flat2dann_forward.1} parent=1 // pred_fallthru
      _
    // Predicated region
    $region50: #{flat2dann_forward.1} parent=1 // pred_check
      _
    $region51: #{flat2dann_forward.1} parent=1 // pred_check_branch
      %123 = sbr.rel (0) target = $region53
    $region52: #{flat2dann_forward.1} parent=1 // pred_region
      %125 = dma.done [#allocation6], 128
    $region53: #{flat2dann_forward.1} parent=1 // pred_fallthru
      _
    // Predicated region
    $region54: #{flat2dann_forward.1} parent=1 // pred_check
      _
    $region55: #{flat2dann_forward.1} parent=1 // pred_check_branch
      %127 = sbr.rel (0) target = $region57
    $region56: #{flat2dann_forward.1} parent=1 // pred_region
      %129 = dma.done [#allocation6], 256
    $region57: #{flat2dann_forward.1} parent=1 // pred_fallthru
      _
    // Predicated region
    $region58: #{flat2dann_forward.1} parent=1 // pred_check
      _
    $region59: #{flat2dann_forward.1} parent=1 // pred_check_branch
      %131 = sbr.rel (0) target = $region61
    $region60: #{flat2dann_forward.1} parent=1 // pred_region
      %133 = dma.done [#allocation9], 16
    $region61: #{flat2dann_forward.1} parent=1 // pred_fallthru
      _
    // Predicated region
    $region62: #{flat2dann_forward.1} parent=1 // pred_check
      _
    $region63: #{flat2dann_forward.1} parent=1 // pred_check_branch
      %135 = sbr.rel (0) target = $region65
    $region64: #{flat2dann_forward.1} parent=1 // pred_region
      %137 = dma.done [#allocation9], 16
    $region65: #{flat2dann_forward.1} parent=1 // pred_fallthru
      _
    // Predicated region
    $region66: #{flat2dann_forward.1} parent=1 // pred_check
      _
    $region67: #{flat2dann_forward.1} parent=1 // pred_check_branch
      %139 = sbr.rel (0) target = $region69
    $region68: #{flat2dann_forward.1} parent=1 // pred_region
      %141 = dma.done [#allocation12], 16
    $region69: #{flat2dann_forward.1} parent=1 // pred_fallthru
      _
    // Predicated region
    $region70: #{flat2dann_forward.1} parent=1 // pred_check
      _
    $region71: #{flat2dann_forward.1} parent=1 // pred_check_branch
      %143 = sbr.rel (0) target = $region73
    $region72: #{flat2dann_forward.1} parent=1 // pred_region
      %145 = dma.done [#allocation12], 16
    $region73: #{flat2dann_forward.1} parent=1 // pred_fallthru
      _
    // Predicated region
    $region74: #{flat2dann_forward.1} parent=1 // pred_check
      _
    $region75: #{flat2dann_forward.1} parent=1 // pred_check_branch
      %147 = sbr.rel (0) target = $region77
    $region76: #{flat2dann_forward.1} parent=1 // pred_region
      %149 = dma.done [#allocation15], 16
    $region77: #{flat2dann_forward.1} parent=1 // pred_fallthru
      _
    %v150 = vld [vmem:[#allocation2] sm:$0xff]
    %v151 = vld [vmem:[#allocation7] sm:$0xff]
    %v152 = vld [vmem:[#allocation7 + $0x8] sm:$0xf]
    %v153 = vld [vmem:[#allocation5] sm:$0xff]
    %v154 = vld [vmem:[%s3] sm:$0xff]
    %v155 = vld [vmem:[%s3 + $0x8] sm:$0xff]
    %v156 = vld [vmem:[%s3 + $0x10] sm:$0xf]
    %vm157 = vcmask 162816
    %v159 = vsel %vm157, %v153, 0
    %vm161 = vcmask 1043456
    %v163 = vsel %vm161, %v156, 0
    %165 = vmatpush.msra.mxu0 0.0
    %166 = vmatpush.msra.mxu0 0.0
    %167 = vmatpush.msra.mxu0 0.0
    %168 = vmatpush.msra.mxu0 0.0
    %169 = vmatpush.msra.mxu0 0.0
    %170 = vmatpush.msra.mxu0 0.0
    %171 = vmatpush.msra.mxu0 0.0
    %172 = vmatpush.msra.mxu0 0.0
    %173 = vmatpush.msra.mxu0 0.0
    %174 = vmatpush.msra.mxu0 0.0
    %175 = vmatpush.msra.mxu0 0.0
    %176 = vmatpush.msra.mxu0 0.0
    %177 = vmatpush.msra.mxu0 0.0
    %178 = vmatpush.msra.mxu0 %v163
    %179 = vmatpush.msra.mxu0 %v155
    %180 = vmatpush.msra.mxu0 %v154
    %181 = vmatmul.f32.gmra.mxu0 %v159
    %v182 = vpop.f32.mrf.mxu0
    %v183 = vadd.f32 0.0, %v182
    %184 = vdwg.mxu0
    %vm185 = vcmask 97280
    %v187 = vsel %vm185, %v150, 0
    %v190 = vsel %vm161, %v152, 0
    %192 = vmatpush.msra.mxu0 0.0
    %193 = vmatpush.msra.mxu0 0.0
    %194 = vmatpush.msra.mxu0 0.0
    %195 = vmatpush.msra.mxu0 0.0
    %196 = vmatpush.msra.mxu0 0.0
    %197 = vmatpush.msra.mxu0 0.0
    %198 = vmatpush.msra.mxu0 0.0
    %199 = vmatpush.msra.mxu0 0.0
    %200 = vmatpush.msra.mxu0 0.0
    %201 = vmatpush.msra.mxu0 0.0
    %202 = vmatpush.msra.mxu0 0.0
    %203 = vmatpush.msra.mxu0 0.0
    %204 = vmatpush.msra.mxu0 0.0
    %205 = vmatpush.msra.mxu0 0.0
    %206 = vmatpush.msra.mxu0 %v190
    %207 = vmatpush.msra.mxu0 %v151
    %208 = vmatmul.f32.gmra.mxu0 %v187
    %v209 = vpop.f32.mrf.mxu0
    %v210 = vadd.f32 %v183, %v209
    %211 = vdwg.mxu0
    %v212 = vld [vmem:[#allocation8] sm:$0x1]
    %v213 = vld [vmem:[#allocation10] sm:$0x1]
    %vm214 = vcmask 261120
    %v215 = vsel %vm214, %v210, 0.0
    %v216 = vrot.slane %v215, 4
    %v217 = vadd.f32 %v215, %v216
    %v218 = vrot.slane %v217, 2
    %v219 = vadd.f32 %v217, %v218
    %v220 = vrot.slane %v219, 1
    %v221 = vadd.f32 %v219, %v220
    %v222 = vmul.f32 %v221, 0.125
    %v223 = vmul.f32 %v210, %v210
    %v224 = vsel %vm214, %v223, 0.0
    %v225 = vrot.slane %v224, 4
    %v226 = vadd.f32 %v224, %v225
    %v227 = vrot.slane %v226, 2
    %v228 = vadd.f32 %v226, %v227
    %v229 = vrot.slane %v228, 1
    %v230 = vadd.f32 %v228, %v229
    %v231 = vmul.f32 %v230, 0.125
    %v232 = vmul.f32 %v222, %v222
    %v233 = vsub.f32 %v231, %v232
    %v234 = vmax.f32 %v233, 0.0
    %v235 = vsub.f32 %v210, %v222
    %v236 = vadd.f32 %v234, 1e-05
    %v237 = vrsqrt.pop %v236
    %v238 = vmul.f32 %v237, %v236
    %v239 = vmul.f32 %v238, %v237
    %v240 = vmul.f32 0.5, %v239
    %v241 = vsub.f32 1.5, %v240
    %v242 = vmul.f32 %v237, %v241
    %vm243 = vweird.f32 %v236
    %vm244 = vweird.f32 %v237
    %vm245 = vmor %vm243, %vm244
    %v246 = vsel %vm245, %v237, %v242
    %v247 = vmul.f32 %v246, %v212
    %v248 = vperm.slane %v247, 0
    %v249 = vmul.f32 %v235, %v248
    %v251 = vperm.slane %v213, 0
    %v253 = vadd.f32 %v249, %v251
    %v254 = vmax.f32 %v253, 0.0
    %v255 = vld [vmem:[%s6] sm:$0xff]
    %v256 = vld [vmem:[%s6 + $0x8] sm:$0xff]
    %v257 = vld [vmem:[%s6 + $0x10] sm:$0xff]
    %v258 = vld [vmem:[%s6 + $0x18] sm:$0xff]
    %v260 = vsel %vm214, %v254, 0
    %262 = vmatpush.msra.mxu0 0.0
    %263 = vmatpush.msra.mxu0 0.0
    %264 = vmatpush.msra.mxu0 0.0
    %265 = vmatpush.msra.mxu0 0.0
    %266 = vmatpush.msra.mxu0 0.0
    %267 = vmatpush.msra.mxu0 0.0
    %268 = vmatpush.msra.mxu0 0.0
    %269 = vmatpush.msra.mxu0 0.0
    %270 = vmatpush.msra.mxu0 0.0
    %271 = vmatpush.msra.mxu0 0.0
    %272 = vmatpush.msra.mxu0 0.0
    %273 = vmatpush.msra.mxu0 0.0
    %274 = vmatpush.msra.mxu0 %v258
    %275 = vmatpush.msra.mxu0 %v257
    %276 = vmatpush.msra.mxu0 %v256
    %277 = vmatpush.msra.mxu0 %v255
    %278 = vmatmul.f32.gmra.mxu0 %v260
    %v279 = vpop.f32.mrf.mxu0
    %v280 = vadd.f32 0.0, %v279
    %281 = vdwg.mxu0
    %v282 = vld [vmem:[#allocation11] sm:$0x1]
    %v283 = vld [vmem:[#allocation13] sm:$0x1]
    %v284 = vsel %vm214, %v280, 0.0
    %v285 = vrot.slane %v284, 4
    %v286 = vadd.f32 %v284, %v285
    %v287 = vrot.slane %v286, 2
    %v288 = vadd.f32 %v286, %v287
    %v289 = vrot.slane %v288, 1
    %v290 = vadd.f32 %v288, %v289
    %v291 = vmul.f32 %v290, 0.125
    %v292 = vmul.f32 %v280, %v280
    %v293 = vsel %vm214, %v292, 0.0
    %v294 = vrot.slane %v293, 4
    %v295 = vadd.f32 %v293, %v294
    %v296 = vrot.slane %v295, 2
    %v297 = vadd.f32 %v295, %v296
    %v298 = vrot.slane %v297, 1
    %v299 = vadd.f32 %v297, %v298
    %v300 = vmul.f32 %v299, 0.125
    %v301 = vmul.f32 %v291, %v291
    %v302 = vsub.f32 %v300, %v301
    %v303 = vmax.f32 %v302, 0.0
    %v304 = vsub.f32 %v280, %v291
    %v305 = vadd.f32 %v303, 1e-05
    %v306 = vrsqrt.pop %v305
    %v307 = vmul.f32 %v306, %v305
    %v308 = vmul.f32 %v307, %v306
    %v309 = vmul.f32 0.5, %v308
    %v310 = vsub.f32 1.5, %v309
    %v311 = vmul.f32 %v306, %v310
    %vm312 = vweird.f32 %v305
    %vm313 = vweird.f32 %v306
    %vm314 = vmor %vm312, %vm313
    %v315 = vsel %vm314, %v306, %v311
    %v316 = vmul.f32 %v315, %v282
    %v317 = vperm.slane %v316, 0
    %v318 = vmul.f32 %v304, %v317
    %v320 = vperm.slane %v283, 0
    %v322 = vadd.f32 %v318, %v320
    %v323 = vmax.f32 %v322, 0.0
    %v324 = vld [vmem:[%s9] sm:$0xff]
    %v325 = vld [vmem:[%s9 + $0x8] sm:$0xff]
    %v326 = vld [vmem:[%s9 + $0x10] sm:$0xff]
    %v327 = vld [vmem:[%s9 + $0x18] sm:$0xff]
    %v328 = vld [vmem:[#allocation14] sm:$0x1]
    %v330 = vperm.slane %v328, 0
    %v333 = vsel %vm214, %v323, 0
    %335 = vmatpush.msra.mxu0 0.0
    %336 = vmatpush.msra.mxu0 0.0
    %337 = vmatpush.msra.mxu0 0.0
    %338 = vmatpush.msra.mxu0 0.0
    %339 = vmatpush.msra.mxu0 0.0
    %340 = vmatpush.msra.mxu0 0.0
    %341 = vmatpush.msra.mxu0 0.0
    %342 = vmatpush.msra.mxu0 0.0
    %343 = vmatpush.msra.mxu0 0.0
    %344 = vmatpush.msra.mxu0 0.0
    %345 = vmatpush.msra.mxu0 0.0
    %346 = vmatpush.msra.mxu0 0.0
    %347 = vmatpush.msra.mxu0 %v327
    %348 = vmatpush.msra.mxu0 %v326
    %349 = vmatpush.msra.mxu0 %v325
    %350 = vmatpush.msra.mxu0 %v324
    %351 = vmatmul.f32.gmra.mxu0 %v333
    %v352 = vpop.f32.mrf.mxu0
    %v353 = vadd.f32 %v330, %v352
    %354 = vdwg.mxu0
    %vm355 = vcmask 130048
    %v356 = vsel %vm355, %v353, -inf
    %357 = vmax.xlane.f32.xlu0 %v356
    %v358 = vpop.xlane.xlu0 %357
    %v359 = vsub.f32 %v353, %v358
    %v360 = vmul.f32 %v359, 1.442695
    %v361 = vpow.pop %v360
    %v362 = vsel %vm355, %v361, 0.0
    %363 = vadd.xlane.f32.xlu0 %v362
    %v364 = vpop.xlane.xlu0 %363
    %v365 = vrcp.pop %v364
    %v366 = vmul.f32 %v364, %v365
    %v367 = vsub.f32 1.0, %v366
    %v368 = vmul.f32 %v365, %v367
    %v369 = vadd.f32 %v365, %v368
    %vm370 = vweird.f32 %v364
    %vm371 = vweird.f32 %v365
    %vm372 = vmor %vm370, %vm371
    %v373 = vsel %vm372, %v365, %v369
    %v374 = vand.u32 2147483647, %v364
    %vm375 = vcmp.eq.f32.partialorder %v374, 8.507059e+37
    %v376 = vand.u32 %v364, 2147483648
    %v377 = vor.u32 1.1754944e-38, %v376
    %v378 = vsel %vm375, %v377, %v373
    %v379 = vmul.f32 %v361, %v378
    %380 = vst.msk [vmem:[#allocation16] sm:$0xff] %vm355, %v379
    // Predicated region
    $region78: #{flat2dann_forward.1} parent=1 // pred_check
      _
    $region79: #{flat2dann_forward.1} parent=1 // pred_check_branch
      %382 = sbr.rel (0) target = $region81
    $region80: #{flat2dann_forward.1} parent=1 // pred_region
      %384 = vsyncadd [#allocation4], 0
      %s386 = sshll.u32 [#allocation16], 4
      %s387 = int_to_ptr.vmem [resolvable:$true] %s386
      %s388 = sshll.u32 %s11, 4
      %s389 = int_to_ptr.hbm [resolvable:$true] %s388
      %391 = dma.vmem_to_hbm [thread:$0]  %s387, 128, %s389, [#allocation4]
    $region81: #{flat2dann_forward.1} parent=1 // pred_fallthru
      _
    // Predicated region
    $region82: #{flat2dann_forward.1} parent=1 // pred_check
      _
    $region83: #{flat2dann_forward.1} parent=1 // pred_check_branch
      %393 = sbr.rel (0) target = $region85
    $region84: #{flat2dann_forward.1} parent=1 // pred_region
      %395 = dma.done [#allocation4], 128
    $region85: #{flat2dann_forward.1} parent=1 // pred_fallthru
      _
    %396 = vsyncpa [#allocation3], 1
    %397 = vsyncpa [#allocation6], 1
    %398 = vsyncpa [#allocation9], 1
    %399 = vsyncpa [#allocation12], 1
    %400 = vsyncpa [#allocation15], 1
    %401 = vsyncpa [#allocation4], 1

</llo_original>
